<compile_context>
chip_gen: v5e
topology: v5e:2x2
jax: 0.10.0
libtpu: 0.0.40
codegen_flags: <defaults>
</compile_context>

<pallas_src>
import numpy as np

import jax
import jax.numpy as jnp
from jax.experimental import pallas as pl
from jax.experimental.pallas import tpu as pltpu


def _round_up(x, m):
    return ((x + m - 1) // m) * m


def _largest_divisor_tile(total, unit, cap):
    """Largest multiple of `unit` that divides `total` and is <= cap."""
    best, t, limit = unit, unit, min(total, cap)
    while t <= limit:
        if total % t == 0:
            best = t
        t += unit
    return best


def _tpu_generation():
    try:
        kind = jax.devices()[0].device_kind.lower()
    except Exception:
        return None
    for g in ("v7", "v6", "v5"):
        if g in kind:
            return g
    return None


def _vmem_plan():
    """(planning budget, vmem_limit_bytes, MLP row target) per generation."""
    gen = _tpu_generation()
    if gen == "v7":
        return 36 << 20, 52 << 20, 256     # 64 MiB physical VMEM per TC
    if gen in ("v5", "v6"):
        return 72 << 20, 100 << 20, 512    # 128 MiB physical; bigger steps
    return 28 << 20, 44 << 20, 256         # unknown: conservative


def intersim_kernel(left_ref, right_ref,
                    w1l_ref, b1l_ref, w2lk_ref, b2lk_ref,
                    w1r_ref, b1r_ref, w2r_ref, b2r_ref,
                    out_ref, lk_ref, rk_ref):
    cdt = w1l_ref.dtype                  # compute dtype (bf16 or f32)
    Bb, Np, Kp = lk_ref.shape
    _, Mp, _ = rk_ref.shape
    _, Tn, Tm = out_ref.shape

    n = pl.program_id(1)
    m = pl.program_id(2)

    # MLPs run once per batch block (first (n, m) tile); lk/rk cached in VMEM
    # scratch and reused by every bilinear output tile of this batch block.
    @pl.when((n == 0) & (m == 0))
    def _():
        def mlp(x_ref, w1, b1, w2, b2):
            x = x_ref[...].astype(cdt)                      # flattened MXU slab
            h = jnp.maximum(
                jnp.dot(x, w1[...], preferred_element_type=jnp.float32)
                + b1[...], 0.0)
            return jnp.dot(h.astype(cdt), w2[...],
                           preferred_element_type=jnp.float32) + b2[...]

        # Left MLP (bilinear kernel pre-folded into w2lk/b2lk on the host).
        lk = mlp(left_ref, w1l_ref, b1l_ref, w2lk_ref, b2lk_ref)   # (Bb*Np, Kp)
        rk = mlp(right_ref, w1r_ref, b1r_ref, w2r_ref, b2r_ref)    # (Bb*Mp, Kp)
        # Sublane-splitting reshape only (Np % 8 == 0, Mp % 8 == 0): layout-
        # preserving.
        lk_ref[...] = lk.reshape(Bb, Np, Kp).astype(lk_ref.dtype)
        rk_ref[...] = rk.reshape(Bb, Mp, Kp).astype(rk_ref.dtype)

    # Bilinear product for this (N, M) output tile: one batched contraction.
    # rk contracts on its lane dim (same operand form as flash-attn q @ k^T),
    # so no explicit XLU transpose of rk is required.
    ns = pl.multiple_of(n * Tn, Tn)
    ms = pl.multiple_of(m * Tm, Tm)
    lk_t = lk_ref[:, pl.ds(ns, Tn), :]      # (Bb, Tn, Kp)
    rk_t = rk_ref[:, pl.ds(ms, Tm), :]      # (Bb, Tm, Kp)
    acc = jnp.einsum("bnk,bmk->bnm", lk_t, rk_t,
                     preferred_element_type=jnp.float32)
    out_ref[...] = acc.astype(out_ref.dtype)


def intersim_forward(left, right, params, *,
                     compute_dtype=jnp.bfloat16, out_dtype=jnp.float32,
                     batch_block=None, n_tile=None, m_tile=None):
    B, N, D = left.shape
    _, M, _ = right.shape
    H = params["w1l"].shape[1]
    Kd = params["w2l"].shape[1]

    cdt = compute_dtype
    cdt_size = np.dtype(cdt).itemsize
    in_size = np.dtype(left.dtype).itemsize
    out_size = np.dtype(out_dtype).itemsize

    # ---- host-side prep -----------------------------------------------------
    # Fold bilinear kernel into the left MLP's second layer (f32, once).
    w2lk = params["w2l"] @ params["kernel"]          # (H, Kd)
    b2lk = params["b2l"] @ params["kernel"]          # (1, Kd)

    # Lane-dense padding of hidden / kernel dims (full MXU columns, unmasked
    # vector loads).  Zero-padded rows/cols are exact no-ops algebraically.
    Hp = _round_up(H, 128)
    Kp = _round_up(Kd, 128)

    def pad2(a, rows, cols):
        return jnp.pad(a, ((0, rows - a.shape[0]), (0, cols - a.shape[1])))

    w1l = pad2(params["w1l"], D, Hp).astype(cdt)
    w1r = pad2(params["w1r"], D, Hp).astype(cdt)
    w2lk_c = pad2(w2lk, Hp, Kp).astype(cdt)
    w2r = pad2(params["w2r"], Hp, Kp).astype(cdt)
    b1l = pad2(params["b1l"], 1, Hp).astype(jnp.float32)
    b1r = pad2(params["b1r"], 1, Hp).astype(jnp.float32)
    b2lk_f = pad2(b2lk, 1, Kp).astype(jnp.float32)
    b2r = pad2(params["b2r"], 1, Kp).astype(jnp.float32)
    # TODO(synk): on v7x, optionally store w1/w2 in fp8 (bf16 activations) to
    # halve weight DMA/VMEM if accuracy allows.

    # N -> multiple of 8 (sublane), M -> multiple of 128 (lane-dense output
    # stores).  Padded rows/cols/batches are sliced away at the end.
    Np = _round_up(N, 8)
    Mp = _round_up(M, 128)

    budget, vmem_limit, row_target = _vmem_plan()

    # Tile selection: bilinear output tile (Tn, Tm) and batch block Bb sized to
    # the per-generation VMEM budget; keep >= 2 batch grid steps when B >= 2 so
    # both v7x TensorCores get work.
    Tn = n_tile or _largest_divisor_tile(Np, 8, 512)
    Tm = m_tile or _largest_divisor_tile(Mp, 128, 512)
    if batch_block is None:
        Bb = max(1, min(B, row_target // max(Np, 1), 32))
        if B >= 2:
            Bb = max(1, min(Bb, B // 2))
    else:
        Bb = batch_block

    def vmem_est(bb, tn, tm):
        weights = 2 * 2 * (D * Hp + Hp * Kp) * cdt_size       # double-buffered
        acts = 2 * bb * (Np + Mp) * D * in_size                # double-buffered
        cache = bb * (Np + Mp) * Kp * cdt_size                 # lk/rk scratch
        mlp_tmp = bb * max(Np, Mp) * Hp * 4                    # hl/hr (f32)
        out_t = 2 * bb * tn * tm * out_size                    # double-buffered
        return weights + acts + cache + mlp_tmp + out_t

    if batch_block is None:
        while Bb > 1 and vmem_est(Bb, Tn, Tm) > budget:
            Bb = max(1, Bb // 2)
    while Tn > 8 and Np % (Tn // 2) == 0 and vmem_est(Bb, Tn, Tm) > budget:
        Tn //= 2
    while Tm > 128 and Mp % (Tm // 2) == 0 and vmem_est(Bb, Tn, Tm) > budget:
        Tm //= 2
    assert Np % Tn == 0 and Mp % Tm == 0

    Bp = _round_up(B, Bb)
    left_p = jnp.pad(left, ((0, Bp - B), (0, Np - N), (0, 0)))
    right_p = jnp.pad(right, ((0, Bp - B), (0, Mp - M), (0, 0)))
    left_flat = left_p.reshape(Bp * Np, D)      # 2D slabs -> rank-2 MXU dots
    right_flat = right_p.reshape(Bp * Mp, D)

    grid = (Bp // Bb, Np // Tn, Mp // Tm)
    # TODO(synk): single-buffer the constant weight blocks
    # (pipeline_mode=pl.Buffered(1)) to halve weight VMEM once that knob is
    # available on the deployed jax version.
    full2d = lambda shape: pl.BlockSpec(shape, lambda b, n, m: (0, 0))

    mlp_flops = 2 * (D * Hp + Hp * Kp)
    cost = pl.CostEstimate(
        flops=int((Bp * Np + Bp * Mp) * mlp_flops + 2 * Bp * Np * Mp * Kp),
        transcendentals=0,
        bytes_accessed=int(left_flat.size * in_size
                           + right_flat.size * in_size
                           + 2 * (D * Hp + Hp * Kp) * cdt_size
                           + Bp * Np * Mp * out_size),
    )

    out_p = pl.pallas_call(
        intersim_kernel,
        out_shape=jax.ShapeDtypeStruct((Bp, Np, Mp), out_dtype),
        grid_spec=pltpu.PrefetchScalarGridSpec(
            num_scalar_prefetch=0,
            grid=grid,
            in_specs=[
                pl.BlockSpec((Bb * Np, D), lambda b, n, m: (b, 0)),  # left rows
                pl.BlockSpec((Bb * Mp, D), lambda b, n, m: (b, 0)),  # right rows
                full2d((D, Hp)),    # w1l
                full2d((1, Hp)),    # b1l
                full2d((Hp, Kp)),   # w2l @ kernel (folded)
                full2d((1, Kp)),    # b2l @ kernel (folded)
                full2d((D, Hp)),    # w1r
                full2d((1, Hp)),    # b1r
                full2d((Hp, Kp)),   # w2r
                full2d((1, Kp)),    # b2r
            ],
            out_specs=pl.BlockSpec((Bb, Tn, Tm), lambda b, n, m: (b, n, m)),
            scratch_shapes=[
                pltpu.VMEM((Bb, Np, Kp), cdt),   # lk cache (per batch block)
                pltpu.VMEM((Bb, Mp, Kp), cdt),   # rk cache (per batch block)
            ],
        ),
        compiler_params=pltpu.CompilerParams(
            dimension_semantics=("parallel", "arbitrary", "arbitrary"),
            vmem_limit_bytes=vmem_limit),
        cost_estimate=cost,
    )(left_flat, right_flat,
      w1l, b1l, w2lk_c, b2lk_f,
      w1r, b1r, w2r, b2r)

    return out_p[:B, :N, :M]


def make_params(key, input_dim, kernel_dim=None, hidden_dim=None, lr_diff=True):
    if kernel_dim is None:
        kernel_dim = input_dim
    if hidden_dim is None:
        hidden_dim = 2 * kernel_dim

    def xavier(k, fan_in, fan_out, shape):
        limit = (6.0 / (fan_in + fan_out)) ** 0.5
        return jax.random.uniform(k, shape, jnp.float32, -limit, limit)

    ks = jax.random.split(key, 9)
    w1l = xavier(ks[0], input_dim, hidden_dim, (input_dim, hidden_dim))
    b1l = jnp.zeros((1, hidden_dim), jnp.float32)
    w2l = xavier(ks[1], hidden_dim, kernel_dim, (hidden_dim, kernel_dim))
    b2l = jnp.zeros((1, kernel_dim), jnp.float32)
    if lr_diff:
        w1r = xavier(ks[2], input_dim, hidden_dim, (input_dim, hidden_dim))
        b1r = jnp.zeros((1, hidden_dim), jnp.float32)
        w2r = xavier(ks[3], hidden_dim, kernel_dim, (hidden_dim, kernel_dim))
        b2r = jnp.zeros((1, kernel_dim), jnp.float32)
    else:
        w1r, b1r, w2r, b2r = w1l, b1l, w2l, b2l
    kernel = xavier(ks[4], kernel_dim, kernel_dim, (kernel_dim, kernel_dim))
    return dict(w1l=w1l, b1l=b1l, w2l=w2l, b2l=b2l,
                w1r=w1r, b1r=b1r, w2r=w2r, b2r=b2r, kernel=kernel)


def intersim_ref(left, right, p):
    def mlp(x, w1, b1, w2, b2):
        return jnp.maximum(x @ w1 + b1, 0.0) @ w2 + b2
    l = mlp(left, p["w1l"], p["b1l"], p["w2l"], p["b2l"])
    r = mlp(right, p["w1r"], p["b1r"], p["w2r"], p["b2r"])
    return jnp.einsum("bnk,kl,bml->bnm", l, p["kernel"], r)


if __name__ == "__main__":
    B, N, M, D = 2, 8, 8, 32   # batch, left nodes, right nodes, input_dim
    key = jax.random.PRNGKey(0)
    k_l, k_r, k_p = jax.random.split(key, 3)

    left = jax.random.normal(k_l, (B, N, D), jnp.float32)
    right = jax.random.normal(k_r, (B, M, D), jnp.float32)
    params = make_params(k_p, input_dim=D)

    ref = intersim_ref(left, right, params)

    # bf16 compute path (MXU-friendly), f32 accumulation.
    out_bf16 = intersim_forward(left, right, params,
                                compute_dtype=jnp.bfloat16)
    jax.block_until_ready(out_bf16)
    assert out_bf16.shape == (B, N, M)
    scale = jnp.max(jnp.abs(ref)) + 1e-6
    assert jnp.max(jnp.abs(out_bf16 - ref)) <= 5e-2 * scale + 1e-3

    # f32 compute path (tight check against the reference).
    out_f32 = intersim_forward(left, right, params,
                               compute_dtype=jnp.float32)
    jax.block_until_ready(out_f32)
    assert out_f32.shape == (B, N, M)
    assert jnp.allclose(out_f32, ref, atol=1e-3, rtol=1e-3)

    print("KERNEL_OK")
</pallas_src>

<mosaic_0001>
module attributes {stable_mosaic.version = 11 : i64} {
  func.func @intersim_kernel(%arg0: i32, %arg1: i32, %arg2: i32, %arg3: memref<8x32xf32, #tpu.memory_space<vmem>>, %arg4: memref<128x32xf32, #tpu.memory_space<vmem>>, %arg5: memref<32x128xbf16, #tpu.memory_space<vmem>>, %arg6: memref<1x128xf32, #tpu.memory_space<vmem>>, %arg7: memref<128x128xbf16, #tpu.memory_space<vmem>>, %arg8: memref<1x128xf32, #tpu.memory_space<vmem>>, %arg9: memref<32x128xbf16, #tpu.memory_space<vmem>>, %arg10: memref<1x128xf32, #tpu.memory_space<vmem>>, %arg11: memref<128x128xbf16, #tpu.memory_space<vmem>>, %arg12: memref<1x128xf32, #tpu.memory_space<vmem>>, %arg13: memref<1x8x128xf32, #tpu.memory_space<vmem>>, %arg14: memref<1x8x128xbf16, #tpu.memory_space<vmem>>, %arg15: memref<1x128x128xbf16, #tpu.memory_space<vmem>>) attributes {dimension_semantics = [#tpu.dimension_semantics<parallel>, #tpu.dimension_semantics<arbitrary>, #tpu.dimension_semantics<arbitrary>], iteration_bounds = array<i64: 2, 1, 1>, scalar_prefetch = 0 : i64, scratch_operands = 2 : i64, tpu.core_type = #tpu.core_type<tc>, window_params = [{transform_indices = @transform_0, window_bounds = array<i64: 8, 32>}, {transform_indices = @transform_1, window_bounds = array<i64: 128, 32>}, {pipeline_mode = #tpu.pipeline_mode<synchronous>, transform_indices = @transform_2, window_bounds = array<i64: 32, 128>}, {pipeline_mode = #tpu.pipeline_mode<synchronous>, transform_indices = @transform_3, window_bounds = array<i64: 1, 128>}, {pipeline_mode = #tpu.pipeline_mode<synchronous>, transform_indices = @transform_4, window_bounds = array<i64: 128, 128>}, {pipeline_mode = #tpu.pipeline_mode<synchronous>, transform_indices = @transform_5, window_bounds = array<i64: 1, 128>}, {pipeline_mode = #tpu.pipeline_mode<synchronous>, transform_indices = @transform_6, window_bounds = array<i64: 32, 128>}, {pipeline_mode = #tpu.pipeline_mode<synchronous>, transform_indices = @transform_7, window_bounds = array<i64: 1, 128>}, {pipeline_mode = #tpu.pipeline_mode<synchronous>, transform_indices = @transform_8, window_bounds = array<i64: 128, 128>}, {pipeline_mode = #tpu.pipeline_mode<synchronous>, transform_indices = @transform_9, window_bounds = array<i64: 1, 128>}, {transform_indices = @transform_10, window_bounds = array<i64: 1, 8, 128>}]} {
    %c0_i32 = arith.constant 0 : i32
    %0 = arith.cmpi eq, %arg1, %c0_i32 : i32
    %c0_i32_0 = arith.constant 0 : i32
    %1 = arith.cmpi eq, %arg2, %c0_i32_0 : i32
    %2 = arith.andi %0, %1 : i1
    %3 = arith.extui %2 : i1 to i32
    %c0_i32_1 = arith.constant 0 : i32
    %4 = arith.cmpi ne, %3, %c0_i32_1 : i32
    scf.if %4 {
      %c0_8 = arith.constant 0 : index
      %c0_9 = arith.constant 0 : index
      %15 = vector.load %arg3[%c0_8, %c0_9] : memref<8x32xf32, #tpu.memory_space<vmem>>, vector<8x32xf32>
      %16 = arith.truncf %15 : vector<8x32xf32> to vector<8x32xbf16>
      %c0_10 = arith.constant 0 : index
      %c0_11 = arith.constant 0 : index
      %17 = vector.load %arg5[%c0_10, %c0_11] : memref<32x128xbf16, #tpu.memory_space<vmem>>, vector<32x128xbf16>
      %cst_12 = arith.constant dense<0.000000e+00> : vector<8x128xf32>
      %18 = tpu.matmul %16, %17, %cst_12 {dimension_numbers = #tpu.dot_dimension_numbers<[1], [0], [0], [1], [0, 0, 1, 1], [], []>} : vector<8x32xbf16>, vector<32x128xbf16>, vector<8x128xf32> -> vector<8x128xf32>
      %c0_13 = arith.constant 0 : index
      %c0_14 = arith.constant 0 : index
      %19 = vector.load %arg6[%c0_13, %c0_14] : memref<1x128xf32, #tpu.memory_space<vmem>>, vector<1x128xf32>
      %20 = vector.broadcast %19 : vector<1x128xf32> to vector<8x128xf32>
      %21 = arith.addf %18, %20 : vector<8x128xf32>
      %cst_15 = arith.constant 0.000000e+00 : f32
      %22 = vector.broadcast %cst_15 : f32 to vector<8x128xf32>
      %23 = arith.maximumf %21, %22 : vector<8x128xf32>
      %24 = arith.truncf %23 : vector<8x128xf32> to vector<8x128xbf16>
      %c0_16 = arith.constant 0 : index
      %c0_17 = arith.constant 0 : index
      %25 = vector.load %arg7[%c0_16, %c0_17] : memref<128x128xbf16, #tpu.memory_space<vmem>>, vector<128x128xbf16>
      %cst_18 = arith.constant dense<0.000000e+00> : vector<8x128xf32>
      %26 = tpu.matmul %24, %25, %cst_18 {dimension_numbers = #tpu.dot_dimension_numbers<[1], [0], [0], [1], [0, 0, 1, 1], [], []>} : vector<8x128xbf16>, vector<128x128xbf16>, vector<8x128xf32> -> vector<8x128xf32>
      %c0_19 = arith.constant 0 : index
      %c0_20 = arith.constant 0 : index
      %27 = vector.load %arg8[%c0_19, %c0_20] : memref<1x128xf32, #tpu.memory_space<vmem>>, vector<1x128xf32>
      %28 = vector.broadcast %27 : vector<1x128xf32> to vector<8x128xf32>
      %29 = arith.addf %26, %28 : vector<8x128xf32>
      %c0_21 = arith.constant 0 : index
      %c0_22 = arith.constant 0 : index
      %30 = vector.load %arg4[%c0_21, %c0_22] : memref<128x32xf32, #tpu.memory_space<vmem>>, vector<128x32xf32>
      %31 = arith.truncf %30 : vector<128x32xf32> to vector<128x32xbf16>
      %c0_23 = arith.constant 0 : index
      %c0_24 = arith.constant 0 : index
      %32 = vector.load %arg9[%c0_23, %c0_24] : memref<32x128xbf16, #tpu.memory_space<vmem>>, vector<32x128xbf16>
      %cst_25 = arith.constant dense<0.000000e+00> : vector<128x128xf32>
      %33 = tpu.matmul %31, %32, %cst_25 {dimension_numbers = #tpu.dot_dimension_numbers<[1], [0], [0], [1], [0, 0, 1, 1], [], []>} : vector<128x32xbf16>, vector<32x128xbf16>, vector<128x128xf32> -> vector<128x128xf32>
      %c0_26 = arith.constant 0 : index
      %c0_27 = arith.constant 0 : index
      %34 = vector.load %arg10[%c0_26, %c0_27] : memref<1x128xf32, #tpu.memory_space<vmem>>, vector<1x128xf32>
      %35 = vector.broadcast %34 : vector<1x128xf32> to vector<128x128xf32>
      %36 = arith.addf %33, %35 : vector<128x128xf32>
      %cst_28 = arith.constant 0.000000e+00 : f32
      %37 = vector.broadcast %cst_28 : f32 to vector<128x128xf32>
      %38 = arith.maximumf %36, %37 : vector<128x128xf32>
      %39 = arith.truncf %38 : vector<128x128xf32> to vector<128x128xbf16>
      %c0_29 = arith.constant 0 : index
      %c0_30 = arith.constant 0 : index
      %40 = vector.load %arg11[%c0_29, %c0_30] : memref<128x128xbf16, #tpu.memory_space<vmem>>, vector<128x128xbf16>
      %cst_31 = arith.constant dense<0.000000e+00> : vector<128x128xf32>
      %41 = tpu.matmul %39, %40, %cst_31 {dimension_numbers = #tpu.dot_dimension_numbers<[1], [0], [0], [1], [0, 0, 1, 1], [], []>} : vector<128x128xbf16>, vector<128x128xbf16>, vector<128x128xf32> -> vector<128x128xf32>
      %c0_32 = arith.constant 0 : index
      %c0_33 = arith.constant 0 : index
      %42 = vector.load %arg12[%c0_32, %c0_33] : memref<1x128xf32, #tpu.memory_space<vmem>>, vector<1x128xf32>
      %43 = vector.broadcast %42 : vector<1x128xf32> to vector<128x128xf32>
      %44 = arith.addf %41, %43 : vector<128x128xf32>
      %45 = vector.shape_cast %29 : vector<8x128xf32> to vector<1x8x128xf32>
      %46 = arith.truncf %45 : vector<1x8x128xf32> to vector<1x8x128xbf16>
      %c0_34 = arith.constant 0 : index
      %c0_35 = arith.constant 0 : index
      %c0_36 = arith.constant 0 : index
      %47 = vector.load %arg14[%c0_34, %c0_35, %c0_36] : memref<1x8x128xbf16, #tpu.memory_space<vmem>>, vector<1x8x128xbf16>
      tpu.vector_store %arg14[%c0_34, %c0_35, %c0_36], %46 {strides = array<i32>} : memref<1x8x128xbf16, #tpu.memory_space<vmem>>, vector<1x8x128xbf16>,
      %48 = vector.shape_cast %44 : vector<128x128xf32> to vector<1x128x128xf32>
      %49 = arith.truncf %48 : vector<1x128x128xf32> to vector<1x128x128xbf16>
      %c0_37 = arith.constant 0 : index
      %c0_38 = arith.constant 0 : index
      %c0_39 = arith.constant 0 : index
      %50 = vector.load %arg15[%c0_37, %c0_38, %c0_39] : memref<1x128x128xbf16, #tpu.memory_space<vmem>>, vector<1x128x128xbf16>
      tpu.vector_store %arg15[%c0_37, %c0_38, %c0_39], %49 {strides = array<i32>} : memref<1x128x128xbf16, #tpu.memory_space<vmem>>, vector<1x128x128xbf16>,
    } else {
    }
    %c8_i32 = arith.constant 8 : i32
    %5 = arith.muli %arg1, %c8_i32 : i32
    %6 = tpu.assume_multiple %5, 8 : i32
    %c128_i32 = arith.constant 128 : i32
    %7 = arith.muli %arg2, %c128_i32 : i32
    %8 = tpu.assume_multiple %7, 128 : i32
    %c0 = arith.constant 0 : index
    %9 = arith.index_cast %6 : i32 to index
    %c0_2 = arith.constant 0 : index
    %10 = vector.load %arg14[%c0, %9, %c0_2] : memref<1x8x128xbf16, #tpu.memory_space<vmem>>, vector<1x8x128xbf16>
    %c0_3 = arith.constant 0 : index
    %11 = arith.index_cast %8 : i32 to index
    %c0_4 = arith.constant 0 : index
    %12 = vector.load %arg15[%c0_3, %11, %c0_4] : memref<1x128x128xbf16, #tpu.memory_space<vmem>>, vector<1x128x128xbf16>
    "tpu.trace_start"() <{level = 10 : i32, message = "bnk,bmk->bnm"}> : () -> ()
    %cst = arith.constant dense<0.000000e+00> : vector<1x8x128xf32>
    %13 = tpu.matmul %10, %12, %cst {dimension_numbers = #tpu.dot_dimension_numbers<[2], [2], [1], [1], [0, 0, 0, 1, 1, 1], [0], [0]>} : vector<1x8x128xbf16>, vector<1x128x128xbf16>, vector<1x8x128xf32> -> vector<1x8x128xf32>
    "tpu.trace_stop"() : () -> ()
    %c0_5 = arith.constant 0 : index
    %c0_6 = arith.constant 0 : index
    %c0_7 = arith.constant 0 : index
    %14 = vector.load %arg13[%c0_5, %c0_6, %c0_7] : memref<1x8x128xf32, #tpu.memory_space<vmem>>, vector<1x8x128xf32>
    tpu.vector_store %arg13[%c0_5, %c0_6, %c0_7], %13 {strides = array<i32>} : memref<1x8x128xf32, #tpu.memory_space<vmem>>, vector<1x8x128xf32>,
    return
  }
  func.func @transform_0(%arg0: i32, %arg1: i32, %arg2: i32) -> (i32, i32) {
    %c0_i32 = arith.constant 0 : i32
    %c0_i32_0 = arith.constant 0 : i32
    return %arg0, %c0_i32 : i32, i32
  }
  func.func @transform_1(%arg0: i32, %arg1: i32, %arg2: i32) -> (i32, i32) {
    %c0_i32 = arith.constant 0 : i32
    %c0_i32_0 = arith.constant 0 : i32
    return %arg0, %c0_i32 : i32, i32
  }
  func.func @transform_2(%arg0: i32, %arg1: i32, %arg2: i32) -> (i32, i32) {
    %c0_i32 = arith.constant 0 : i32
    %c0_i32_0 = arith.constant 0 : i32
    %c0_i32_1 = arith.constant 0 : i32
    return %c0_i32, %c0_i32_0 : i32, i32
  }
  func.func @transform_3(%arg0: i32, %arg1: i32, %arg2: i32) -> (i32, i32) {
    %c0_i32 = arith.constant 0 : i32
    %c0_i32_0 = arith.constant 0 : i32
    %c0_i32_1 = arith.constant 0 : i32
    return %c0_i32, %c0_i32_0 : i32, i32
  }
  func.func @transform_4(%arg0: i32, %arg1: i32, %arg2: i32) -> (i32, i32) {
    %c0_i32 = arith.constant 0 : i32
    %c0_i32_0 = arith.constant 0 : i32
    %c0_i32_1 = arith.constant 0 : i32
    return %c0_i32, %c0_i32_0 : i32, i32
  }
  func.func @transform_5(%arg0: i32, %arg1: i32, %arg2: i32) -> (i32, i32) {
    %c0_i32 = arith.constant 0 : i32
    %c0_i32_0 = arith.constant 0 : i32
    %c0_i32_1 = arith.constant 0 : i32
    return %c0_i32, %c0_i32_0 : i32, i32
  }
  func.func @transform_6(%arg0: i32, %arg1: i32, %arg2: i32) -> (i32, i32) {
    %c0_i32 = arith.constant 0 : i32
    %c0_i32_0 = arith.constant 0 : i32
    %c0_i32_1 = arith.constant 0 : i32
    return %c0_i32, %c0_i32_0 : i32, i32
  }
  func.func @transform_7(%arg0: i32, %arg1: i32, %arg2: i32) -> (i32, i32) {
    %c0_i32 = arith.constant 0 : i32
    %c0_i32_0 = arith.constant 0 : i32
    %c0_i32_1 = arith.constant 0 : i32
    return %c0_i32, %c0_i32_0 : i32, i32
  }
  func.func @transform_8(%arg0: i32, %arg1: i32, %arg2: i32) -> (i32, i32) {
    %c0_i32 = arith.constant 0 : i32
    %c0_i32_0 = arith.constant 0 : i32
    %c0_i32_1 = arith.constant 0 : i32
    return %c0_i32, %c0_i32_0 : i32, i32
  }
  func.func @transform_9(%arg0: i32, %arg1: i32, %arg2: i32) -> (i32, i32) {
    %c0_i32 = arith.constant 0 : i32
    %c0_i32_0 = arith.constant 0 : i32
    %c0_i32_1 = arith.constant 0 : i32
    return %c0_i32, %c0_i32_0 : i32, i32
  }
  func.func @transform_10(%arg0: i32, %arg1: i32, %arg2: i32) -> (i32, i32, i32) {
    %c0_i32 = arith.constant 0 : i32
    return %arg0, %arg1, %arg2 : i32, i32, i32
  }
}

</mosaic_0001>

<llo_original>
// kernel: tpu_custom_call.1
$region0: #{tpu_custom_call.1}
  #allocation0 [shape = 'u32[]', space=smem, size = 0x4, offset = 0x4, fixed_abs, tag = 'smem constant byte address 0x4 - core index']
  #allocation1 [shape = 'u32[72,128]{1,0:T(1,128)}', space=vmem, size = 0x9000, scoped, tag = 'internal scratch']
  #allocation2 [shape = 'bf16[1,8,128]{2,1,0:T(8,128)(2,1)}', space=vmem, size = 0x800, scoped, tag = 'scratch operand']
  #allocation3 [shape = 'bf16[1,128,128]{2,1,0:T(8,128)(2,1)}', space=vmem, size = 0x8000, scoped, tag = 'scratch operand']
  %s0 = inlined_call_operand.vmem [shape: f32[16,32], index: 0, kind: input, shape index: {}]
  %s1 = inlined_call_operand.vmem [shape: f32[256,32], index: 1, kind: input, shape index: {}]
  %s2 = inlined_call_operand.vmem [shape: bf16[32,128], index: 2, kind: input, shape index: {}]
  %s3 = inlined_call_operand.vmem [shape: f32[1,128], index: 3, kind: input, shape index: {}]
  %s4 = inlined_call_operand.vmem [shape: bf16[128,128], index: 4, kind: input, shape index: {}]
  %s5 = inlined_call_operand.vmem [shape: f32[1,128], index: 5, kind: input, shape index: {}]
  %s6 = inlined_call_operand.vmem [shape: bf16[32,128], index: 6, kind: input, shape index: {}]
  %s7 = inlined_call_operand.vmem [shape: f32[1,128], index: 7, kind: input, shape index: {}]
  %s8 = inlined_call_operand.vmem [shape: bf16[128,128], index: 8, kind: input, shape index: {}]
  %s9 = inlined_call_operand.vmem [shape: f32[1,128], index: 9, kind: input, shape index: {}]
  %s10 = inlined_call_operand.hbm [shape: f32[2,8,128], index: 10, kind: output, shape index: {}]
  %s11 = sld [smem:[#allocation0]]
  $region77: #{tpu_custom_call.1} parent=0
    _
  %s13 = ssub.s32 1, %s11
  %s14 = scalar_select 0, %s13, %s11
  $region1: #{tpu_custom_call.1} parent=0
    #allocation4 [shape = 'u8[8192]{0}', space=vmem, size = 0x2000, scoped, tag = 'output window, operand 0']
    #allocation5 [shape = 's32[2]{0}', space=sflag, size = 0x8, scoped, tag = 'scoped memory for tpu_custom_call.1']
    %15 = vsyncpa [#allocation5], 0
    %s16 = scalar_lea.sflag [#allocation5], 1
    %17 = vsyncpa %s16, 0
    loop: start=0, step=1, limit=4
    $region2: #{tpu_custom_call.1} parent=1 // loop_pre_header
      _
    $region3: #{tpu_custom_call.1} parent=1 // loop_header
      %s19 = sphi 0, %s23
      %p20 = scmp.ge.s32.totalorder %s19, 4
      %s26 = sphi 0, %s45
      %s27 = sphi 0, %s41
      %s28 = sphi 0, %s37
      %s29 = sphi 0, %s26
      %s30 = sphi 0, %s27
      %s31 = sphi 0, %s28
      %s32 = sphi 0, %s29
      %s33 = sphi 0, %s30
      %s34 = sphi 0, %s31
      %s48 = sphi 0, %s50
      %s51 = sphi 0, %s48
      %s52 = sphi 0, %s51
      %s68 = sphi 0, %s52
      %s74 = sphi 0, %s76
      %s77 = sphi 0, %s74
      %s78 = sphi 0, %s77
      %s94 = sphi 0, %s78
      %s98 = sphi 0, %s98
      %s100 = sphi 0, %s98
      %s101 = sphi 0, %s100
      %s115 = sphi 0, %s101
      %s119 = sphi 0, %s119
      %s121 = sphi 0, %s119
      %s122 = sphi 0, %s121
      %s136 = sphi 0, %s122
      %s140 = sphi 0, %s140
      %s142 = sphi 0, %s140
      %s143 = sphi 0, %s142
      %s157 = sphi 0, %s143
      %s161 = sphi 0, %s161
      %s163 = sphi 0, %s161
      %s164 = sphi 0, %s163
      %s178 = sphi 0, %s164
      %s182 = sphi 0, %s182
      %s184 = sphi 0, %s182
      %s185 = sphi 0, %s184
      %s199 = sphi 0, %s185
      %s203 = sphi 0, %s203
      %s205 = sphi 0, %s203
      %s206 = sphi 0, %s205
      %s220 = sphi 0, %s206
      %s224 = sphi 0, %s224
      %s226 = sphi 0, %s224
      %s227 = sphi 0, %s226
      %s241 = sphi 0, %s227
      %s245 = sphi 0, %s245
      %s247 = sphi 0, %s245
      %s248 = sphi 0, %s247
      %s262 = sphi 0, %s248
      %s272 = sphi 0, %s274
      %s275 = sphi 0, %s272
      %s276 = sphi 0, %s275
      %s292 = sphi 0, %s276
    $region4: #{tpu_custom_call.1} parent=1 // loop_header_branch
      %22 = sbr.rel (%p20) target = $region8
    $region5: #{tpu_custom_call.1} parent=1 // loop_body
      %s24 = ssub.s32 %s19, 1
      %s25 = ssub.s32 %s19, 2
      %s35 = sadd.s32 1, %s28
      %p36 = scmp.ge.s32.totalorder %s35, 1
      %s37 = scalar_select %p36, 0, %s35
      %s38 = sadd.s32 1, %s27
      %s39 = scalar_select %p36, %s38, %s27
      %p40 = scmp.ge.s32.totalorder %s39, 1
      %s41 = scalar_select %p40, 0, %s39
      %s42 = sadd.s32 1, %s26
      %s43 = scalar_select %p40, %s42, %s26
      %p44 = scmp.ge.s32.totalorder %s43, 2
      %s45 = scalar_select %p44, 0, %s43
      %s46 = ssub.s32 %s26, %s45
      %p47 = scmp.eq.s32.totalorder %s46, 0
      %s49 = sadd.s32 %s48, 1
      %s50 = scalar_select %p47, %s48, %s49
      %p53 = pneg %p47
      %p54 = scmp.eq.s32.totalorder %s19, 1
      %p55 = por %p53, %p54
      %p56 = scmp.ne.s32.totalorder %s48, %s51
      %p57 = scmp.eq.s32.totalorder %s19, 0
      %p58 = por %p56, %p57
      %p59 = scmp.ne.s32.totalorder %s48, %s51
      %p60 = scmp.eq.s32.totalorder %s24, 1
      %p61 = por %p59, %p60
      %p62 = scmp.ne.s32.totalorder %s51, %s52
      %p63 = scmp.eq.s32.totalorder %s24, 0
      %p64 = por %p62, %p63
      %p65 = scmp.ne.s32.totalorder %s51, %s52
      %p66 = scmp.eq.s32.totalorder %s25, 1
      %p67 = por %p65, %p66
      %p69 = scmp.ne.s32.totalorder %s52, %s68
      %p70 = scmp.eq.s32.totalorder %s25, 0
      %p71 = por %p69, %p70
      %s72 = ssub.s32 %s26, %s45
      %p73 = scmp.eq.s32.totalorder %s72, 0
      %s75 = sadd.s32 %s74, 1
      %s76 = scalar_select %p73, %s74, %s75
      %p79 = pneg %p73
      %p80 = scmp.eq.s32.totalorder %s19, 1
      %p81 = por %p79, %p80
      %p82 = scmp.ne.s32.totalorder %s74, %s77
      %p83 = scmp.eq.s32.totalorder %s19, 0
      %p84 = por %p82, %p83
      %p85 = scmp.ne.s32.totalorder %s74, %s77
      %p86 = scmp.eq.s32.totalorder %s24, 1
      %p87 = por %p85, %p86
      %p88 = scmp.ne.s32.totalorder %s77, %s78
      %p89 = scmp.eq.s32.totalorder %s24, 0
      %p90 = por %p88, %p89
      %p91 = scmp.ne.s32.totalorder %s77, %s78
      %p92 = scmp.eq.s32.totalorder %s25, 1
      %p93 = por %p91, %p92
      %p95 = scmp.ne.s32.totalorder %s78, %s94
      %p96 = scmp.eq.s32.totalorder %s25, 0
      %p97 = por %p95, %p96
      %s99 = sadd.s32 %s98, 1
      %p102 = scmp.eq.s32.totalorder %s19, 1
      %p103 = scmp.ne.s32.totalorder %s98, %s100
      %p104 = scmp.eq.s32.totalorder %s19, 0
      %p105 = por %p103, %p104
      %p106 = scmp.ne.s32.totalorder %s98, %s100
      %p107 = scmp.eq.s32.totalorder %s24, 1
      %p108 = por %p106, %p107
      %p109 = scmp.ne.s32.totalorder %s100, %s101
      %p110 = scmp.eq.s32.totalorder %s24, 0
      %p111 = por %p109, %p110
      %p112 = scmp.ne.s32.totalorder %s100, %s101
      %p113 = scmp.eq.s32.totalorder %s25, 1
      %p114 = por %p112, %p113
      %p116 = scmp.ne.s32.totalorder %s101, %s115
      %p117 = scmp.eq.s32.totalorder %s25, 0
      %p118 = por %p116, %p117
      %s120 = sadd.s32 %s119, 1
      %p123 = scmp.eq.s32.totalorder %s19, 1
      %p124 = scmp.ne.s32.totalorder %s119, %s121
      %p125 = scmp.eq.s32.totalorder %s19, 0
      %p126 = por %p124, %p125
      %p127 = scmp.ne.s32.totalorder %s119, %s121
      %p128 = scmp.eq.s32.totalorder %s24, 1
      %p129 = por %p127, %p128
      %p130 = scmp.ne.s32.totalorder %s121, %s122
      %p131 = scmp.eq.s32.totalorder %s24, 0
      %p132 = por %p130, %p131
      %p133 = scmp.ne.s32.totalorder %s121, %s122
      %p134 = scmp.eq.s32.totalorder %s25, 1
      %p135 = por %p133, %p134
      %p137 = scmp.ne.s32.totalorder %s122, %s136
      %p138 = scmp.eq.s32.totalorder %s25, 0
      %p139 = por %p137, %p138
      %s141 = sadd.s32 %s140, 1
      %p144 = scmp.eq.s32.totalorder %s19, 1
      %p145 = scmp.ne.s32.totalorder %s140, %s142
      %p146 = scmp.eq.s32.totalorder %s19, 0
      %p147 = por %p145, %p146
      %p148 = scmp.ne.s32.totalorder %s140, %s142
      %p149 = scmp.eq.s32.totalorder %s24, 1
      %p150 = por %p148, %p149
      %p151 = scmp.ne.s32.totalorder %s142, %s143
      %p152 = scmp.eq.s32.totalorder %s24, 0
      %p153 = por %p151, %p152
      %p154 = scmp.ne.s32.totalorder %s142, %s143
      %p155 = scmp.eq.s32.totalorder %s25, 1
      %p156 = por %p154, %p155
      %p158 = scmp.ne.s32.totalorder %s143, %s157
      %p159 = scmp.eq.s32.totalorder %s25, 0
      %p160 = por %p158, %p159
      %s162 = sadd.s32 %s161, 1
      %p165 = scmp.eq.s32.totalorder %s19, 1
      %p166 = scmp.ne.s32.totalorder %s161, %s163
      %p167 = scmp.eq.s32.totalorder %s19, 0
      %p168 = por %p166, %p167
      %p169 = scmp.ne.s32.totalorder %s161, %s163
      %p170 = scmp.eq.s32.totalorder %s24, 1
      %p171 = por %p169, %p170
      %p172 = scmp.ne.s32.totalorder %s163, %s164
      %p173 = scmp.eq.s32.totalorder %s24, 0
      %p174 = por %p172, %p173
      %p175 = scmp.ne.s32.totalorder %s163, %s164
      %p176 = scmp.eq.s32.totalorder %s25, 1
      %p177 = por %p175, %p176
      %p179 = scmp.ne.s32.totalorder %s164, %s178
      %p180 = scmp.eq.s32.totalorder %s25, 0
      %p181 = por %p179, %p180
      %s183 = sadd.s32 %s182, 1
      %p186 = scmp.eq.s32.totalorder %s19, 1
      %p187 = scmp.ne.s32.totalorder %s182, %s184
      %p188 = scmp.eq.s32.totalorder %s19, 0
      %p189 = por %p187, %p188
      %p190 = scmp.ne.s32.totalorder %s182, %s184
      %p191 = scmp.eq.s32.totalorder %s24, 1
      %p192 = por %p190, %p191
      %p193 = scmp.ne.s32.totalorder %s184, %s185
      %p194 = scmp.eq.s32.totalorder %s24, 0
      %p195 = por %p193, %p194
      %p196 = scmp.ne.s32.totalorder %s184, %s185
      %p197 = scmp.eq.s32.totalorder %s25, 1
      %p198 = por %p196, %p197
      %p200 = scmp.ne.s32.totalorder %s185, %s199
      %p201 = scmp.eq.s32.totalorder %s25, 0
      %p202 = por %p200, %p201
      %s204 = sadd.s32 %s203, 1
      %p207 = scmp.eq.s32.totalorder %s19, 1
      %p208 = scmp.ne.s32.totalorder %s203, %s205
      %p209 = scmp.eq.s32.totalorder %s19, 0
      %p210 = por %p208, %p209
      %p211 = scmp.ne.s32.totalorder %s203, %s205
      %p212 = scmp.eq.s32.totalorder %s24, 1
      %p213 = por %p211, %p212
      %p214 = scmp.ne.s32.totalorder %s205, %s206
      %p215 = scmp.eq.s32.totalorder %s24, 0
      %p216 = por %p214, %p215
      %p217 = scmp.ne.s32.totalorder %s205, %s206
      %p218 = scmp.eq.s32.totalorder %s25, 1
      %p219 = por %p217, %p218
      %p221 = scmp.ne.s32.totalorder %s206, %s220
      %p222 = scmp.eq.s32.totalorder %s25, 0
      %p223 = por %p221, %p222
      %s225 = sadd.s32 %s224, 1
      %p228 = scmp.eq.s32.totalorder %s19, 1
      %p229 = scmp.ne.s32.totalorder %s224, %s226
      %p230 = scmp.eq.s32.totalorder %s19, 0
      %p231 = por %p229, %p230
      %p232 = scmp.ne.s32.totalorder %s224, %s226
      %p233 = scmp.eq.s32.totalorder %s24, 1
      %p234 = por %p232, %p233
      %p235 = scmp.ne.s32.totalorder %s226, %s227
      %p236 = scmp.eq.s32.totalorder %s24, 0
      %p237 = por %p235, %p236
      %p238 = scmp.ne.s32.totalorder %s226, %s227
      %p239 = scmp.eq.s32.totalorder %s25, 1
      %p240 = por %p238, %p239
      %p242 = scmp.ne.s32.totalorder %s227, %s241
      %p243 = scmp.eq.s32.totalorder %s25, 0
      %p244 = por %p242, %p243
      %s246 = sadd.s32 %s245, 1
      %p249 = scmp.eq.s32.totalorder %s19, 1
      %p250 = scmp.ne.s32.totalorder %s245, %s247
      %p251 = scmp.eq.s32.totalorder %s19, 0
      %p252 = por %p250, %p251
      %p253 = scmp.ne.s32.totalorder %s245, %s247
      %p254 = scmp.eq.s32.totalorder %s24, 1
      %p255 = por %p253, %p254
      %p256 = scmp.ne.s32.totalorder %s247, %s248
      %p257 = scmp.eq.s32.totalorder %s24, 0
      %p258 = por %p256, %p257
      %p259 = scmp.ne.s32.totalorder %s247, %s248
      %p260 = scmp.eq.s32.totalorder %s25, 1
      %p261 = por %p259, %p260
      %p263 = scmp.ne.s32.totalorder %s248, %s262
      %p264 = scmp.eq.s32.totalorder %s25, 0
      %p265 = por %p263, %p264
      %s266 = ssub.s32 %s26, %s45
      %s267 = ssub.s32 %s27, %s41
      %s268 = sor.u32 %s266, %s267
      %s269 = ssub.s32 %s28, %s37
      %s270 = sor.u32 %s268, %s269
      %p271 = scmp.eq.s32.totalorder %s270, 0
      %s273 = sadd.s32 %s272, 1
      %s274 = scalar_select %p271, %s272, %s273
      %p277 = pneg %p271
      %p278 = scmp.eq.s32.totalorder %s19, 1
      %p279 = por %p277, %p278
      %p280 = scmp.ne.s32.totalorder %s272, %s275
      %p281 = scmp.eq.s32.totalorder %s19, 0
      %p282 = por %p280, %p281
      %p283 = scmp.ne.s32.totalorder %s272, %s275
      %p284 = scmp.eq.s32.totalorder %s24, 1
      %p285 = por %p283, %p284
      %p286 = scmp.ne.s32.totalorder %s275, %s276
      %p287 = scmp.eq.s32.totalorder %s24, 0
      %p288 = por %p286, %p287
      %p289 = scmp.ne.s32.totalorder %s275, %s276
      %p290 = scmp.eq.s32.totalorder %s25, 1
      %p291 = por %p289, %p290
      %p293 = scmp.ne.s32.totalorder %s276, %s292
      %p294 = scmp.eq.s32.totalorder %s25, 0
      %p295 = por %p293, %p294
      %p296 = scmp.le.s32.totalorder 1, %s19
      %p297 = scmp.lt.s32.totalorder %s19, 3
      %p298 = pnand %p296, %p297
      %p299 = pneg %p298
      // Predicated region
      $region9: #{tpu_custom_call.1} parent=5 // pred_check
        _
      $region10: #{tpu_custom_call.1} parent=5 // pred_check_branch
        %301 = sbr.rel (%p298) target = $region12
      $region11: #{tpu_custom_call.1} parent=5 // pred_region
        %s302 = ssub.s32 %s19, 1
        // Predicated region
        $region13: #{tpu_custom_call.1} parent=11 // pred_check
          %p303 = pneg %p111
        $region14: #{tpu_custom_call.1} parent=11 // pred_check_branch
          %305 = sbr.rel (%p303) target = $region16
        $region15: #{tpu_custom_call.1} parent=11 // pred_region
          _
        $region16: #{tpu_custom_call.1} parent=11 // pred_fallthru
          _
        // Predicated region
        $region17: #{tpu_custom_call.1} parent=11 // pred_check
          %p306 = pneg %p132
        $region18: #{tpu_custom_call.1} parent=11 // pred_check_branch
          %308 = sbr.rel (%p306) target = $region20
        $region19: #{tpu_custom_call.1} parent=11 // pred_region
          _
        $region20: #{tpu_custom_call.1} parent=11 // pred_fallthru
          _
        // Predicated region
        $region21: #{tpu_custom_call.1} parent=11 // pred_check
          %p309 = pneg %p153
        $region22: #{tpu_custom_call.1} parent=11 // pred_check_branch
          %311 = sbr.rel (%p309) target = $region24
        $region23: #{tpu_custom_call.1} parent=11 // pred_region
          _
        $region24: #{tpu_custom_call.1} parent=11 // pred_fallthru
          _
        // Predicated region
        $region25: #{tpu_custom_call.1} parent=11 // pred_check
          %p312 = pneg %p174
        $region26: #{tpu_custom_call.1} parent=11 // pred_check_branch
          %314 = sbr.rel (%p312) target = $region28
        $region27: #{tpu_custom_call.1} parent=11 // pred_region
          _
        $region28: #{tpu_custom_call.1} parent=11 // pred_fallthru
          _
        // Predicated region
        $region29: #{tpu_custom_call.1} parent=11 // pred_check
          %p315 = pneg %p195
        $region30: #{tpu_custom_call.1} parent=11 // pred_check_branch
          %317 = sbr.rel (%p315) target = $region32
        $region31: #{tpu_custom_call.1} parent=11 // pred_region
          _
        $region32: #{tpu_custom_call.1} parent=11 // pred_fallthru
          _
        // Predicated region
        $region33: #{tpu_custom_call.1} parent=11 // pred_check
          %p318 = pneg %p216
        $region34: #{tpu_custom_call.1} parent=11 // pred_check_branch
          %320 = sbr.rel (%p318) target = $region36
        $region35: #{tpu_custom_call.1} parent=11 // pred_region
          _
        $region36: #{tpu_custom_call.1} parent=11 // pred_fallthru
          _
        // Predicated region
        $region37: #{tpu_custom_call.1} parent=11 // pred_check
          %p321 = pneg %p237
        $region38: #{tpu_custom_call.1} parent=11 // pred_check_branch
          %323 = sbr.rel (%p321) target = $region40
        $region39: #{tpu_custom_call.1} parent=11 // pred_region
          _
        $region40: #{tpu_custom_call.1} parent=11 // pred_fallthru
          _
        // Predicated region
        $region41: #{tpu_custom_call.1} parent=11 // pred_check
          %p324 = pneg %p258
        $region42: #{tpu_custom_call.1} parent=11 // pred_check_branch
          %326 = sbr.rel (%p324) target = $region44
        $region43: #{tpu_custom_call.1} parent=11 // pred_region
          _
        $region44: #{tpu_custom_call.1} parent=11 // pred_fallthru
          _
      $region12: #{tpu_custom_call.1} parent=5 // pred_fallthru
        _
      %p327 = scmp.lt.s32.totalorder %s19, 2
      // Predicated region
      $region45: #{tpu_custom_call.1} parent=5 // pred_check
        %p328 = pneg %p327
      $region46: #{tpu_custom_call.1} parent=5 // pred_check_branch
        %330 = sbr.rel (%p328) target = $region48
      $region47: #{tpu_custom_call.1} parent=5 // pred_region
        // Predicated region
        $region49: #{tpu_custom_call.1} parent=47 // pred_check
          %p331 = pneg %p58
        $region50: #{tpu_custom_call.1} parent=47 // pred_check_branch
          %333 = sbr.rel (%p331) target = $region52
        $region51: #{tpu_custom_call.1} parent=47 // pred_region
          %p334 = scmp.lt.s32.totalorder %s26, 1
          %s335 = scalar_select %p334, %s26, 1
          %s336 = smul.addr %s335, 8
          %s337 = scalar_lea.vmem %s0, %s336
        $region52: #{tpu_custom_call.1} parent=47 // pred_fallthru
          _
        // Predicated region
        $region53: #{tpu_custom_call.1} parent=47 // pred_check
          %p338 = pneg %p84
        $region54: #{tpu_custom_call.1} parent=47 // pred_check_branch
          %340 = sbr.rel (%p338) target = $region56
        $region55: #{tpu_custom_call.1} parent=47 // pred_region
          %s341 = smul.u32 16, %s26
          %p342 = scmp.lt.s32.totalorder %s341, 31
          %s343 = scalar_select %p342, %s341, 31
          %s344 = smul.addr %s343, 8
          %s345 = scalar_lea.vmem %s1, %s344
          %s346 = smul.u32 16, %s26
        $region56: #{tpu_custom_call.1} parent=47 // pred_fallthru
          _
      $region48: #{tpu_custom_call.1} parent=5 // pred_fallthru
        _
      %p347 = scmp.le.s32.totalorder 1, %s19
      %p348 = scmp.lt.s32.totalorder %s19, 3
      %p349 = pnand %p347, %p348
      %p350 = pneg %p349
      // Predicated region
      $region57: #{tpu_custom_call.1} parent=5 // pred_check
        _
      $region58: #{tpu_custom_call.1} parent=5 // pred_check_branch
        %352 = sbr.rel (%p349) target = $region60
      $region59: #{tpu_custom_call.1} parent=5 // pred_region
        %s353 = ssub.s32 %s19, 1
        %p354 = scmp.lt.s32.totalorder %s29, 1
        %s355 = scalar_select %p354, %s29, 1
        %s356 = smul.addr %s355, 8
        %s357 = scalar_lea.vmem %s0, %s356
        %p358 = pneg %p64
        %p359 = pneg %p61
        %s360 = smul.u32 16, %s29
        %p361 = scmp.lt.s32.totalorder %s360, 31
        %s362 = scalar_select %p361, %s360, 31
        %s363 = smul.addr %s362, 8
        %s364 = scalar_lea.vmem %s1, %s363
        %p365 = pneg %p90
        %p366 = pneg %p87
        %p367 = pneg %p111
        %p368 = pneg %p108
        %p369 = pneg %p132
        %p370 = pneg %p129
        %p371 = pneg %p153
        %p372 = pneg %p150
        %p373 = pneg %p174
        %p374 = pneg %p171
        %p375 = pneg %p195
        %p376 = pneg %p192
        %p377 = pneg %p216
        %p378 = pneg %p213
        %p379 = pneg %p237
        %p380 = pneg %p234
        %p381 = pneg %p258
        %p382 = pneg %p255
        %p383 = pneg %p288
        %p384 = pneg %p285
        %s385 = sand.u32 %s275, 1
        %s386 = scalar_lea.sflag [#allocation5], %s385
        %s387 = sand.u32 %s275, 1
        %s388 = smul.addr %s387, 8
        %s389 = scalar_lea.vmem [#allocation4], %s388
        %p390 = scmp.lt.s32.totalorder %s29, 1
        %s391 = scalar_select %p390, %s29, 1
        %s392 = smul.addr %s391, 8
        %s393 = scalar_lea.vmem %s0, %s392
        %s394 = smul.u32 16, %s29
        %p395 = scmp.lt.s32.totalorder %s394, 31
        %s396 = scalar_select %p395, %s394, 31
        %s397 = smul.addr %s396, 8
        %s398 = scalar_lea.vmem %s1, %s397
        %s399 = smul.u32 16, %s29
        %p401 = scmp.eq.s32.totalorder %s30, 0
        %p402 = scmp.eq.s32.totalorder %s31, 0
        %p403 = pnand %p401, %p402
        %p404 = pneg %p403
        // Predicated region
        $region61: #{tpu_custom_call.1} parent=59 // pred_check
          _
        $region62: #{tpu_custom_call.1} parent=59 // pred_check_branch
          %406 = sbr.rel (%p403) target = $region64
        $region63: #{tpu_custom_call.1} parent=59 // pred_region
          %v407 = vld [vmem:[%s393] sm:$0xff]
          %v408 = vpack.c.bf16 %v407, %v407
          %v409 = vld [vmem:[%s2] sm:$0xf]
          %v410 = vld [vmem:[%s2 + $0x4] sm:$0xf]
          %v411 = vld [vmem:[%s2 + $0x8] sm:$0xf]
          %v412 = vld [vmem:[%s2 + $0xc] sm:$0xf]
          %v413 = vld [vmem:[%s3] sm:$0x1]
          %v415 = vperm.slane %v413, 0
          %v421 = vunpack.c.l.b16 %v409
          %v422 = vunpack.c.l.b16 %v410
          %v423 = vunpack.c.l.b16 %v411
          %v424 = vunpack.c.l.b16 %v412
          %v425 = vpack.c.b16 %v422, %v421
          %v426 = vpack.c.b16 %v424, %v423
          %vm429 = vcmask 261120
          %v431 = vsel %vm429, %v408, 0
          %433 = vmatpush.bf16.msra.mxu0 0
          %434 = vmatpush.bf16.msra.mxu0 0
          %435 = vmatpush.bf16.msra.mxu0 0
          %436 = vmatpush.bf16.msra.mxu0 0
          %437 = vmatpush.bf16.msra.mxu0 0
          %438 = vmatpush.bf16.msra.mxu0 0
          %439 = vmatpush.bf16.msra.mxu0 %v426
          %440 = vmatpush.bf16.msra.mxu0 %v425
          %441 = vmatmul.bf16.gmra.mxu0 %v431
          %v442 = vpop.f32.mrf.mxu0
          %v443 = vadd.f32 %v415, %v442
          %v444 = vpop.f32.mrf.mxu0
          %445 = vdwg.mxu0
          %v446 = vmax.f32 %v443, 0.0
          %v447 = vpack.c.bf16 %v446, %v446
          %v448 = vld [vmem:[%s4] sm:$0xf]
          %v449 = vld [vmem:[%s4 + $0x4] sm:$0xf]
          %v450 = vld [vmem:[%s4 + $0x8] sm:$0xf]
          %v451 = vld [vmem:[%s4 + $0xc] sm:$0xf]
          %v452 = vld [vmem:[%s4 + $0x10] sm:$0xf]
          %v453 = vld [vmem:[%s4 + $0x14] sm:$0xf]
          %v454 = vld [vmem:[%s4 + $0x18] sm:$0xf]
          %v455 = vld [vmem:[%s4 + $0x1c] sm:$0xf]
          %v456 = vld [vmem:[%s4 + $0x20] sm:$0xf]
          %v457 = vld [vmem:[%s4 + $0x24] sm:$0xf]
          %v458 = vld [vmem:[%s4 + $0x28] sm:$0xf]
          %v459 = vld [vmem:[%s4 + $0x2c] sm:$0xf]
          %v460 = vld [vmem:[%s4 + $0x30] sm:$0xf]
          %v461 = vld [vmem:[%s4 + $0x34] sm:$0xf]
          %v462 = vld [vmem:[%s4 + $0x38] sm:$0xf]
          %v463 = vld [vmem:[%s4 + $0x3c] sm:$0xf]
          %v464 = vld [vmem:[%s5] sm:$0x1]
          %v466 = vperm.slane %v464, 0
          %v484 = vunpack.c.l.b16 %v448
          %v485 = vunpack.c.l.b16 %v449
          %v486 = vunpack.c.l.b16 %v450
          %v487 = vunpack.c.l.b16 %v451
          %v488 = vunpack.c.l.b16 %v452
          %v489 = vunpack.c.l.b16 %v453
          %v490 = vunpack.c.l.b16 %v454
          %v491 = vunpack.c.l.b16 %v455
          %v492 = vunpack.c.l.b16 %v456
          %v493 = vunpack.c.l.b16 %v457
          %v494 = vunpack.c.l.b16 %v458
          %v495 = vunpack.c.l.b16 %v459
          %v496 = vunpack.c.l.b16 %v460
          %v497 = vunpack.c.l.b16 %v461
          %v498 = vunpack.c.l.b16 %v462
          %v499 = vunpack.c.l.b16 %v463
          %v500 = vpack.c.b16 %v485, %v484
          %v501 = vpack.c.b16 %v487, %v486
          %v502 = vpack.c.b16 %v489, %v488
          %v503 = vpack.c.b16 %v491, %v490
          %v504 = vpack.c.b16 %v493, %v492
          %v505 = vpack.c.b16 %v495, %v494
          %v506 = vpack.c.b16 %v497, %v496
          %v507 = vpack.c.b16 %v499, %v498
          %516 = vmatpush.bf16.msra.mxu0 %v507
          %517 = vmatpush.bf16.msra.mxu0 %v506
          %518 = vmatpush.bf16.msra.mxu0 %v505
          %519 = vmatpush.bf16.msra.mxu0 %v504
          %520 = vmatpush.bf16.msra.mxu0 %v503
          %521 = vmatpush.bf16.msra.mxu0 %v502
          %522 = vmatpush.bf16.msra.mxu0 %v501
          %523 = vmatpush.bf16.msra.mxu0 %v500
          %524 = vmatmul.bf16.gmra.mxu0 %v447
          %v525 = vpop.f32.mrf.mxu0
          %v526 = vadd.f32 %v466, %v525
          %v527 = vpop.f32.mrf.mxu0
          %528 = vdwg.mxu0
          %v529 = vld [vmem:[%s398] sm:$0xff]
          %v530 = vld [vmem:[%s398 + $0x8] sm:$0xff]
          %v531 = vld [vmem:[%s398 + $0x10] sm:$0xff]
          %v532 = vld [vmem:[%s398 + $0x18] sm:$0xff]
          %v533 = vld [vmem:[%s398 + $0x20] sm:$0xff]
          %v534 = vld [vmem:[%s398 + $0x28] sm:$0xff]
          %v535 = vld [vmem:[%s398 + $0x30] sm:$0xff]
          %v536 = vld [vmem:[%s398 + $0x38] sm:$0xff]
          %v537 = vld [vmem:[%s398 + $0x40] sm:$0xff]
          %v538 = vld [vmem:[%s398 + $0x48] sm:$0xff]
          %v539 = vld [vmem:[%s398 + $0x50] sm:$0xff]
          %v540 = vld [vmem:[%s398 + $0x58] sm:$0xff]
          %v541 = vld [vmem:[%s398 + $0x60] sm:$0xff]
          %v542 = vld [vmem:[%s398 + $0x68] sm:$0xff]
          %v543 = vld [vmem:[%s398 + $0x70] sm:$0xff]
          %v544 = vld [vmem:[%s398 + $0x78] sm:$0xff]
          %v545 = vpack.c.bf16 %v530, %v529
          %v546 = vpack.c.bf16 %v532, %v531
          %v547 = vpack.c.bf16 %v534, %v533
          %v548 = vpack.c.bf16 %v536, %v535
          %v549 = vpack.c.bf16 %v538, %v537
          %v550 = vpack.c.bf16 %v540, %v539
          %v551 = vpack.c.bf16 %v542, %v541
          %v552 = vpack.c.bf16 %v544, %v543
          %v553 = vld [vmem:[%s6] sm:$0xf]
          %v554 = vld [vmem:[%s6 + $0x4] sm:$0xf]
          %v555 = vld [vmem:[%s6 + $0x8] sm:$0xf]
          %v556 = vld [vmem:[%s6 + $0xc] sm:$0xf]
          %v557 = vld [vmem:[%s7] sm:$0x1]
          %v559 = vperm.slane %v557, 0
          %v565 = vunpack.c.l.b16 %v553
          %v566 = vunpack.c.l.b16 %v554
          %v567 = vunpack.c.l.b16 %v555
          %v568 = vunpack.c.l.b16 %v556
          %v569 = vpack.c.b16 %v566, %v565
          %v570 = vpack.c.b16 %v568, %v567
          %v574 = vsel %vm429, %v545, 0
          %v577 = vsel %vm429, %v546, 0
          %v580 = vsel %vm429, %v547, 0
          %v583 = vsel %vm429, %v548, 0
          %v586 = vsel %vm429, %v549, 0
          %v589 = vsel %vm429, %v550, 0
          %v592 = vsel %vm429, %v551, 0
          %v595 = vsel %vm429, %v552, 0
          %597 = vmatpush.bf16.msra.mxu0 0
          %598 = vmatpush.bf16.msra.mxu0 0
          %599 = vmatpush.bf16.msra.mxu0 0
          %600 = vmatpush.bf16.msra.mxu0 0
          %601 = vmatpush.bf16.msra.mxu0 0
          %602 = vmatpush.bf16.msra.mxu0 0
          %603 = vmatpush.bf16.msra.mxu0 %v570
          %604 = vmatpush.bf16.msra.mxu0 %v569
          %605 = vmatmul.bf16.gmra.mxu0 %v574
          %v606 = vpop.f32.mrf.mxu0
          %v607 = vadd.f32 %v559, %v606
          %v608 = vpop.f32.mrf.mxu0
          %v609 = vadd.f32 %v559, %v608
          %610 = vmatmul.bf16.gmra.mxu0 %v577
          %v611 = vpop.f32.mrf.mxu0
          %v612 = vadd.f32 %v559, %v611
          %v613 = vpop.f32.mrf.mxu0
          %v614 = vadd.f32 %v559, %v613
          %615 = vmatmul.bf16.gmra.mxu0 %v580
          %v616 = vpop.f32.mrf.mxu0
          %v617 = vadd.f32 %v559, %v616
          %v618 = vpop.f32.mrf.mxu0
          %v619 = vadd.f32 %v559, %v618
          %620 = vmatmul.bf16.gmra.mxu0 %v583
          %v621 = vpop.f32.mrf.mxu0
          %v622 = vadd.f32 %v559, %v621
          %v623 = vpop.f32.mrf.mxu0
          %v624 = vadd.f32 %v559, %v623
          %625 = vmatmul.bf16.gmra.mxu0 %v586
          %v626 = vpop.f32.mrf.mxu0
          %v627 = vadd.f32 %v559, %v626
          %v628 = vpop.f32.mrf.mxu0
          %v629 = vadd.f32 %v559, %v628
          %630 = vmatmul.bf16.gmra.mxu0 %v589
          %v631 = vpop.f32.mrf.mxu0
          %v632 = vadd.f32 %v559, %v631
          %v633 = vpop.f32.mrf.mxu0
          %v634 = vadd.f32 %v559, %v633
          %635 = vmatmul.bf16.gmra.mxu0 %v592
          %v636 = vpop.f32.mrf.mxu0
          %v637 = vadd.f32 %v559, %v636
          %v638 = vpop.f32.mrf.mxu0
          %v639 = vadd.f32 %v559, %v638
          %640 = vmatmul.bf16.gmra.mxu0 %v595
          %v641 = vpop.f32.mrf.mxu0
          %v642 = vadd.f32 %v559, %v641
          %v643 = vpop.f32.mrf.mxu0
          %v644 = vadd.f32 %v559, %v643
          %645 = vdwg.mxu0
          %v646 = vmax.f32 %v607, 0.0
          %v647 = vmax.f32 %v609, 0.0
          %v648 = vmax.f32 %v612, 0.0
          %v649 = vmax.f32 %v614, 0.0
          %v650 = vmax.f32 %v617, 0.0
          %v651 = vmax.f32 %v619, 0.0
          %v652 = vmax.f32 %v622, 0.0
          %v653 = vmax.f32 %v624, 0.0
          %v654 = vmax.f32 %v627, 0.0
          %v655 = vmax.f32 %v629, 0.0
          %v656 = vmax.f32 %v632, 0.0
          %v657 = vmax.f32 %v634, 0.0
          %v658 = vmax.f32 %v637, 0.0
          %v659 = vmax.f32 %v639, 0.0
          %v660 = vmax.f32 %v642, 0.0
          %v661 = vmax.f32 %v644, 0.0
          %v662 = vpack.c.bf16 %v647, %v646
          %v663 = vpack.c.bf16 %v649, %v648
          %v664 = vpack.c.bf16 %v651, %v650
          %v665 = vpack.c.bf16 %v653, %v652
          %v666 = vpack.c.bf16 %v655, %v654
          %v667 = vpack.c.bf16 %v657, %v656
          %v668 = vpack.c.bf16 %v659, %v658
          %v669 = vpack.c.bf16 %v661, %v660
          %v670 = vld [vmem:[%s8] sm:$0xf]
          %v671 = vld [vmem:[%s8 + $0x4] sm:$0xf]
          %v672 = vld [vmem:[%s8 + $0x8] sm:$0xf]
          %v673 = vld [vmem:[%s8 + $0xc] sm:$0xf]
          %v674 = vld [vmem:[%s8 + $0x10] sm:$0xf]
          %v675 = vld [vmem:[%s8 + $0x14] sm:$0xf]
          %v676 = vld [vmem:[%s8 + $0x18] sm:$0xf]
          %v677 = vld [vmem:[%s8 + $0x1c] sm:$0xf]
          %v678 = vld [vmem:[%s8 + $0x20] sm:$0xf]
          %v679 = vld [vmem:[%s8 + $0x24] sm:$0xf]
          %v680 = vld [vmem:[%s8 + $0x28] sm:$0xf]
          %v681 = vld [vmem:[%s8 + $0x2c] sm:$0xf]
          %v682 = vld [vmem:[%s8 + $0x30] sm:$0xf]
          %v683 = vld [vmem:[%s8 + $0x34] sm:$0xf]
          %v684 = vld [vmem:[%s8 + $0x38] sm:$0xf]
          %v685 = vld [vmem:[%s8 + $0x3c] sm:$0xf]
          %v686 = vld [vmem:[%s9] sm:$0x1]
          %v688 = vperm.slane %v686, 0
          %v706 = vunpack.c.l.b16 %v670
          %v707 = vunpack.c.l.b16 %v671
          %v708 = vunpack.c.l.b16 %v672
          %v709 = vunpack.c.l.b16 %v673
          %v710 = vunpack.c.l.b16 %v674
          %v711 = vunpack.c.l.b16 %v675
          %v712 = vunpack.c.l.b16 %v676
          %v713 = vunpack.c.l.b16 %v677
          %v714 = vunpack.c.l.b16 %v678
          %v715 = vunpack.c.l.b16 %v679
          %v716 = vunpack.c.l.b16 %v680
          %v717 = vunpack.c.l.b16 %v681
          %v718 = vunpack.c.l.b16 %v682
          %v719 = vunpack.c.l.b16 %v683
          %v720 = vunpack.c.l.b16 %v684
          %v721 = vunpack.c.l.b16 %v685
          %v722 = vpack.c.b16 %v707, %v706
          %v723 = vpack.c.b16 %v709, %v708
          %v724 = vpack.c.b16 %v711, %v710
          %v725 = vpack.c.b16 %v713, %v712
          %v726 = vpack.c.b16 %v715, %v714
          %v727 = vpack.c.b16 %v717, %v716
          %v728 = vpack.c.b16 %v719, %v718
          %v729 = vpack.c.b16 %v721, %v720
          %738 = vmatpush.bf16.msra.mxu0 %v729
          %739 = vmatpush.bf16.msra.mxu0 %v728
          %740 = vmatpush.bf16.msra.mxu0 %v727
          %741 = vmatpush.bf16.msra.mxu0 %v726
          %742 = vmatpush.bf16.msra.mxu0 %v725
          %743 = vmatpush.bf16.msra.mxu0 %v724
          %744 = vmatpush.bf16.msra.mxu0 %v723
          %745 = vmatpush.bf16.msra.mxu0 %v722
          %746 = vmatmul.bf16.gmra.mxu0 %v662
          %v747 = vpop.f32.mrf.mxu0
          %v748 = vadd.f32 %v688, %v747
          %v749 = vpop.f32.mrf.mxu0
          %v750 = vadd.f32 %v688, %v749
          %751 = vmatmul.bf16.gmra.mxu0 %v663
          %v752 = vpop.f32.mrf.mxu0
          %v753 = vadd.f32 %v688, %v752
          %v754 = vpop.f32.mrf.mxu0
          %v755 = vadd.f32 %v688, %v754
          %756 = vmatmul.bf16.gmra.mxu0 %v664
          %v757 = vpop.f32.mrf.mxu0
          %v758 = vadd.f32 %v688, %v757
          %v759 = vpop.f32.mrf.mxu0
          %v760 = vadd.f32 %v688, %v759
          %761 = vmatmul.bf16.gmra.mxu0 %v665
          %v762 = vpop.f32.mrf.mxu0
          %v763 = vadd.f32 %v688, %v762
          %v764 = vpop.f32.mrf.mxu0
          %v765 = vadd.f32 %v688, %v764
          %766 = vmatmul.bf16.gmra.mxu0 %v666
          %v767 = vpop.f32.mrf.mxu0
          %v768 = vadd.f32 %v688, %v767
          %v769 = vpop.f32.mrf.mxu0
          %v770 = vadd.f32 %v688, %v769
          %771 = vmatmul.bf16.gmra.mxu0 %v667
          %v772 = vpop.f32.mrf.mxu0
          %v773 = vadd.f32 %v688, %v772
          %v774 = vpop.f32.mrf.mxu0
          %v775 = vadd.f32 %v688, %v774
          %776 = vmatmul.bf16.gmra.mxu0 %v668
          %v777 = vpop.f32.mrf.mxu0
          %v778 = vadd.f32 %v688, %v777
          %v779 = vpop.f32.mrf.mxu0
          %v780 = vadd.f32 %v688, %v779
          %781 = vmatmul.bf16.gmra.mxu0 %v669
          %v782 = vpop.f32.mrf.mxu0
          %v783 = vadd.f32 %v688, %v782
          %v784 = vpop.f32.mrf.mxu0
          %v785 = vadd.f32 %v688, %v784
          %786 = vdwg.mxu0
          %v787 = vpack.c.bf16 %v526, %v526
          %788 = vst [vmem:[#allocation2] sm:$0xf] %v787
          %v789 = vpack.c.bf16 %v748, %v748
          %v790 = vpack.c.bf16 %v750, %v750
          %v791 = vpack.c.bf16 %v753, %v753
          %v792 = vpack.c.bf16 %v755, %v755
          %v793 = vpack.c.bf16 %v758, %v758
          %v794 = vpack.c.bf16 %v760, %v760
          %v795 = vpack.c.bf16 %v763, %v763
          %v796 = vpack.c.bf16 %v765, %v765
          %v797 = vpack.c.bf16 %v768, %v768
          %v798 = vpack.c.bf16 %v770, %v770
          %v799 = vpack.c.bf16 %v773, %v773
          %v800 = vpack.c.bf16 %v775, %v775
          %v801 = vpack.c.bf16 %v778, %v778
          %v802 = vpack.c.bf16 %v780, %v780
          %v803 = vpack.c.bf16 %v783, %v783
          %v804 = vpack.c.bf16 %v785, %v785
          %805 = vst [vmem:[#allocation3] sm:$0xf] %v789
          %806 = vst [vmem:[#allocation3 + $0x4] sm:$0xf] %v790
          %807 = vst [vmem:[#allocation3 + $0x8] sm:$0xf] %v791
          %808 = vst [vmem:[#allocation3 + $0xc] sm:$0xf] %v792
          %809 = vst [vmem:[#allocation3 + $0x10] sm:$0xf] %v793
          %810 = vst [vmem:[#allocation3 + $0x14] sm:$0xf] %v794
          %811 = vst [vmem:[#allocation3 + $0x18] sm:$0xf] %v795
          %812 = vst [vmem:[#allocation3 + $0x1c] sm:$0xf] %v796
          %813 = vst [vmem:[#allocation3 + $0x20] sm:$0xf] %v797
          %814 = vst [vmem:[#allocation3 + $0x24] sm:$0xf] %v798
          %815 = vst [vmem:[#allocation3 + $0x28] sm:$0xf] %v799
          %816 = vst [vmem:[#allocation3 + $0x2c] sm:$0xf] %v800
          %817 = vst [vmem:[#allocation3 + $0x30] sm:$0xf] %v801
          %818 = vst [vmem:[#allocation3 + $0x34] sm:$0xf] %v802
          %819 = vst [vmem:[#allocation3 + $0x38] sm:$0xf] %v803
          %820 = vst [vmem:[#allocation3 + $0x3c] sm:$0xf] %v804
        $region64: #{tpu_custom_call.1} parent=59 // pred_fallthru
          _
        %s821 = smul.u32 %s30, 8
        %s822 = smul.u32 %s31, 128
        %s823 = sshra.s32 %s821, 3
        %s824 = sand.u32 %s821, 7
        %s825 = smul.addr %s823, 4
        %s826 = scalar_lea.vmem [#allocation2], %s825
        %v827 = vld [vmem:[%s826] sm:$0xf]
        %s828 = sshra.s32 %s822, 3
        %s829 = sand.u32 %s822, 7
        %s830 = smul.addr %s828, 4
        %s831 = scalar_lea.vmem [#allocation3], %s830
        %v832 = vld [vmem:[%s831] sm:$0xf]
        %v833 = vld [vmem:[%s831 + $0x4] sm:$0xf]
        %v834 = vld [vmem:[%s831 + $0x8] sm:$0xf]
        %v835 = vld [vmem:[%s831 + $0xc] sm:$0xf]
        %v836 = vld [vmem:[%s831 + $0x10] sm:$0xf]
        %v837 = vld [vmem:[%s831 + $0x14] sm:$0xf]
        %v838 = vld [vmem:[%s831 + $0x18] sm:$0xf]
        %v839 = vld [vmem:[%s831 + $0x1c] sm:$0xf]
        %v840 = vld [vmem:[%s831 + $0x20] sm:$0xf]
        %v841 = vld [vmem:[%s831 + $0x24] sm:$0xf]
        %v842 = vld [vmem:[%s831 + $0x28] sm:$0xf]
        %v843 = vld [vmem:[%s831 + $0x2c] sm:$0xf]
        %v844 = vld [vmem:[%s831 + $0x30] sm:$0xf]
        %v845 = vld [vmem:[%s831 + $0x34] sm:$0xf]
        %v846 = vld [vmem:[%s831 + $0x38] sm:$0xf]
        %v847 = vld [vmem:[%s831 + $0x3c] sm:$0xf]
        %v864 = vunpack.c.l.b16 %v832
        %v865 = vunpack.c.l.b16 %v833
        %v866 = vunpack.c.l.b16 %v834
        %v867 = vunpack.c.l.b16 %v835
        %v868 = vunpack.c.l.b16 %v836
        %v869 = vunpack.c.l.b16 %v837
        %v870 = vunpack.c.l.b16 %v838
        %v871 = vunpack.c.l.b16 %v839
        %v872 = vunpack.c.l.b16 %v840
        %v873 = vunpack.c.l.b16 %v841
        %v874 = vunpack.c.l.b16 %v842
        %v875 = vunpack.c.l.b16 %v843
        %v876 = vunpack.c.l.b16 %v844
        %v877 = vunpack.c.l.b16 %v845
        %v878 = vunpack.c.l.b16 %v846
        %v879 = vunpack.c.l.b16 %v847
        %v880 = vpack.c.b16 %v865, %v864
        %v881 = vpack.c.b16 %v867, %v866
        %v882 = vpack.c.b16 %v869, %v868
        %v883 = vpack.c.b16 %v871, %v870
        %v884 = vpack.c.b16 %v873, %v872
        %v885 = vpack.c.b16 %v875, %v874
        %v886 = vpack.c.b16 %v877, %v876
        %v887 = vpack.c.b16 %v879, %v878
        %896 = vmatpush.bf16.xpose.msra.mxu0 %v887
        %897 = vmatpush.bf16.xpose.msra.mxu0 %v886
        %898 = vmatpush.bf16.xpose.msra.mxu0 %v885
        %899 = vmatpush.bf16.xpose.msra.mxu0 %v884
        %900 = vmatpush.bf16.xpose.msra.mxu0 %v883
        %901 = vmatpush.bf16.xpose.msra.mxu0 %v882
        %902 = vmatpush.bf16.xpose.msra.mxu0 %v881
        %903 = vmatpush.bf16.xpose.msra.mxu0 %v880
        %904 = vmatmul.bf16.gmra.mxu0 %v827
        %v905 = vpop.f32.mrf.mxu0
        %v906 = vadd.f32 0.0, %v905
        %v907 = vpop.f32.mrf.mxu0
        %908 = vdwg.mxu0
        %909 = vst [vmem:[%s389] sm:$0xff] %v906
        %s910 = sand.u32 %s275, 1
        %s911 = scalar_lea.sflag [#allocation5], %s910
        %s912 = sand.u32 %s275, 1
        %s913 = smul.addr %s912, 8
        %s914 = scalar_lea.vmem [#allocation4], %s913
        // Predicated region
        $region65: #{tpu_custom_call.1} parent=59 // pred_check
          %p915 = pneg %p285
        $region66: #{tpu_custom_call.1} parent=59 // pred_check_branch
          %917 = sbr.rel (%p915) target = $region68
        $region67: #{tpu_custom_call.1} parent=59 // pred_region
          %919 = vsyncadd %s911, 0
          %s920 = sadd.s32 %s31, %s30
          %s921 = sadd.s32 %s920, %s29
          %s922 = smul.addr %s921, 8
          %s923 = scalar_lea.hbm %s10, %s922
          %s925 = sshll.u32 %s914, 4
          %s926 = int_to_ptr.vmem [resolvable:$true] %s925
          %s927 = sshll.u32 %s923, 4
          %s928 = int_to_ptr.hbm [resolvable:$true] %s927
          %930 = dma.vmem_to_hbm [thread:$0]  %s926, 128, %s928, %s911
        $region68: #{tpu_custom_call.1} parent=59 // pred_fallthru
          _
      $region60: #{tpu_custom_call.1} parent=5 // pred_fallthru
        _
      %p931 = scmp.le.s32.totalorder 2, %s19
      // Predicated region
      $region69: #{tpu_custom_call.1} parent=5 // pred_check
        %p932 = pneg %p931
      $region70: #{tpu_custom_call.1} parent=5 // pred_check_branch
        %934 = sbr.rel (%p932) target = $region72
      $region71: #{tpu_custom_call.1} parent=5 // pred_region
        %s935 = ssub.s32 %s19, 2
        // Predicated region
        $region73: #{tpu_custom_call.1} parent=71 // pred_check
          %p936 = pneg %p291
        $region74: #{tpu_custom_call.1} parent=71 // pred_check_branch
          %938 = sbr.rel (%p936) target = $region76
        $region75: #{tpu_custom_call.1} parent=71 // pred_region
          %s939 = sand.u32 %s276, 1
          %s940 = scalar_lea.sflag [#allocation5], %s939
          %s941 = sand.u32 %s276, 1
          %s942 = smul.addr %s941, 8
          %s943 = scalar_lea.vmem [#allocation4], %s942
          %945 = dma.done %s940, 128
        $region76: #{tpu_custom_call.1} parent=71 // pred_fallthru
          _
      $region72: #{tpu_custom_call.1} parent=5 // pred_fallthru
        _
    $region6: #{tpu_custom_call.1} parent=1 // loop_footer
      %s23 = sadd.s32 1, %s19
    $region7: #{tpu_custom_call.1} parent=1 // loop_footer_branch
      %18 = sbr.rel target = $region3
    $region8: #{tpu_custom_call.1} parent=1 // loop_exit
      _
    %946 = vsyncpa [#allocation5], 1
    %s947 = scalar_lea.sflag [#allocation5], 1
    %948 = vsyncpa %s947, 1

</llo_original>
